<compile_context>
chip_gen: v5e
topology: v5e:2x2
jax: 0.10.0
libtpu: 0.0.40
codegen_flags: <defaults>
</compile_context>

<pallas_src>
import jax
import jax.numpy as jnp
from jax.experimental import pallas as pl
from jax.experimental.pallas import tpu as pltpu


def _round_up(x, m):
    return ((x + m - 1) // m) * m


def _make_mlp_kernel(num_layers, final_is_scalar):
    """Build a kernel for a `num_layers`-deep MLP in transposed layout.

    Ref order: x_ref, (w1, b1, w2, b2, ..., wN, bN), out_ref
      x_ref : (input_dim, TILE_B)           -- batch on the lane axis
      w_l   : (d_out_l, d_in_l)  (PyTorch nn.Linear layout)
              except the last layer when d_out == 1, stored as (d_in, 1)
      b_l   : (d_out_l, 1)
      out   : (d_out, TILE_B)               -- lane-dense
    """

    def kernel(*refs):
        x_ref, out_ref = refs[0], refs[-1]
        wb = refs[1:-1]

        h = x_ref[...]                                    # (d_in, TILE_B)
        for l in range(num_layers - 1):
            w = wb[2 * l][...]                            # (d_out_l, d_in_l)
            b = wb[2 * l + 1][...]                        # (d_out_l, 1)
            h = jnp.dot(w, h, preferred_element_type=jnp.float32)
            h = jnp.maximum(h + b, 0.0)                   # bias+ReLU, lane-dense

        w = wb[2 * (num_layers - 1)][...]
        b = wb[2 * (num_layers - 1) + 1][...]
        if final_is_scalar:
            # Final layer has a single output: VPU multiply + cross-sublane
            # (XLU) reduce instead of a 1-column MXU matmul.
            v = jnp.sum(h * w, axis=0, keepdims=True) + b     # (1, TILE_B)
        else:
            v = jnp.dot(w, h, preferred_element_type=jnp.float32) + b
        out_ref[...] = v.astype(out_ref.dtype)

    return kernel


def value_network_forward(x, params, *, tile_b=1024):
    """Forward pass of ValueNetwork.

    x:      (B, input_dim) float32
    params: list of (W, b) with W in PyTorch nn.Linear layout (out, in) and
            b of shape (out,).
    Returns (B, d_out) float32, matching `x @ W1.T + b1 -> ReLU -> ...`.
    """
    B, input_dim = x.shape
    num_layers = len(params)
    d_out = params[-1][0].shape[0]
    final_is_scalar = (d_out == 1)

    # ---- batch tile selection -------------------------------------------
    if B <= tile_b:
        TILE_B = max(128, _round_up(B, 128))       # single-tile path
    else:
        TILE_B = tile_b                            # streamed, double-buffered
    B_pad = _round_up(B, TILE_B)
    if B_pad != B:
        x = jnp.pad(x, ((0, B_pad - B), (0, 0)))
    x_t = x.astype(jnp.float32).T                  # (input_dim, B_pad)

    # ---- operands + BlockSpecs -------------------------------------------
    ops = [x_t]
    in_specs = [pl.BlockSpec((input_dim, TILE_B), lambda i: (0, i))]

    def resident(a):
        # Constant index_map: DMA'd once, stays in VMEM for the whole grid.
        return pl.BlockSpec(a.shape, lambda i: (0, 0))

    for l, (w, b) in enumerate(params):
        w = jnp.asarray(w, jnp.float32)
        b = jnp.asarray(b, jnp.float32)
        if l == num_layers - 1 and final_is_scalar:
            w = w.T                                # (d_in, 1) column for VPU path
        b = b.reshape(-1, 1)                       # (d_out_l, 1) column
        ops += [w, b]
        in_specs += [resident(w), resident(b)]

    out_rows = 1 if final_is_scalar else d_out

    flops = 2 * B_pad * sum(int(w.shape[0]) * int(w.shape[1]) for w, _ in params)
    bytes_accessed = 4 * (x_t.size + B_pad * out_rows
                          + sum(int(w.size) + int(b.size) for w, b in params))

    out_t = pl.pallas_call(
        _make_mlp_kernel(num_layers, final_is_scalar),
        out_shape=jax.ShapeDtypeStruct((out_rows, B_pad), jnp.float32),
        grid=(B_pad // TILE_B,),
        in_specs=in_specs,
        out_specs=pl.BlockSpec((out_rows, TILE_B), lambda i: (0, i)),
        compiler_params=pltpu.CompilerParams(
            dimension_semantics=("parallel",)),      # megacore on v7x
        cost_estimate=pl.CostEstimate(
            flops=flops, transcendentals=0, bytes_accessed=bytes_accessed),
    )(*ops)

    return out_t[:, :B].T                            # back to (B, d_out)


def init_mlp_params(key, input_dim, mlp_dims):
    """Deterministic init mimicking nn.Linear default (uniform +/- 1/sqrt(fan_in)).
    Weights stored in PyTorch layout (out_features, in_features)."""
    dims = [input_dim] + list(mlp_dims)
    params = []
    for i in range(len(dims) - 1):
        fan_in, fan_out = dims[i], dims[i + 1]
        key, kw, kb = jax.random.split(key, 3)
        bound = 1.0 / jnp.sqrt(jnp.float32(fan_in))
        W = jax.random.uniform(kw, (fan_out, fan_in), jnp.float32, -bound, bound)
        b = jax.random.uniform(kb, (fan_out,), jnp.float32, -bound, bound)
        params.append((W, b))
    return params


def value_network_ref(x, params):
    h = x
    for i, (W, b) in enumerate(params):
        h = h @ W.T + b
        if i != len(params) - 1:
            h = jnp.maximum(h, 0.0)
    return h


if __name__ == "__main__":
    key = jax.random.PRNGKey(0)
    kx, kp, kx2 = jax.random.split(key, 3)

    # Small shapes consistent with CADRL's ValueNetwork (joint state -> scalar value).
    batch = 8
    input_dim = 16
    mlp_dims = [32, 32, 1]

    x = jax.random.normal(kx, (batch, input_dim), jnp.float32)
    params = init_mlp_params(kp, input_dim, mlp_dims)

    out = jax.block_until_ready(value_network_forward(x, params))
    ref = value_network_ref(x, params)
    assert out.shape == (batch, mlp_dims[-1])
    assert jnp.allclose(out, ref, atol=1e-5, rtol=1e-5), "mismatch vs JAX reference"

    # Exercise the multi-tile batch grid + padding path (3 tiles of 128, B not a
    # multiple of the tile) to validate the pipelined / padded case as well.
    x2 = jax.random.normal(kx2, (300, input_dim), jnp.float32)
    out2 = jax.block_until_ready(value_network_forward(x2, params, tile_b=128))
    ref2 = value_network_ref(x2, params)
    assert out2.shape == (300, mlp_dims[-1])
    assert jnp.allclose(out2, ref2, atol=1e-5, rtol=1e-5), "mismatch (tiled path)"

    print("KERNEL_OK")
</pallas_src>

<mosaic_0001>
module attributes {stable_mosaic.version = 11 : i64} {
  func.func @kernel(%arg0: i32, %arg1: memref<16x128xf32, #tpu.memory_space<vmem>>, %arg2: memref<32x16xf32, #tpu.memory_space<vmem>>, %arg3: memref<32x1xf32, #tpu.memory_space<vmem>>, %arg4: memref<32x32xf32, #tpu.memory_space<vmem>>, %arg5: memref<32x1xf32, #tpu.memory_space<vmem>>, %arg6: memref<32x1xf32, #tpu.memory_space<vmem>>, %arg7: memref<1x1xf32, #tpu.memory_space<vmem>>, %arg8: memref<1x128xf32, #tpu.memory_space<vmem>>) attributes {dimension_semantics = [#tpu.dimension_semantics<parallel>], iteration_bounds = array<i64: 1>, scalar_prefetch = 0 : i64, scratch_operands = 0 : i64, tpu.core_type = #tpu.core_type<tc>, window_params = [{transform_indices = @transform_0, window_bounds = array<i64: 16, 128>}, {pipeline_mode = #tpu.pipeline_mode<synchronous>, transform_indices = @transform_1, window_bounds = array<i64: 32, 16>}, {pipeline_mode = #tpu.pipeline_mode<synchronous>, transform_indices = @transform_2, window_bounds = array<i64: 32, 1>}, {pipeline_mode = #tpu.pipeline_mode<synchronous>, transform_indices = @transform_3, window_bounds = array<i64: 32, 32>}, {pipeline_mode = #tpu.pipeline_mode<synchronous>, transform_indices = @transform_4, window_bounds = array<i64: 32, 1>}, {pipeline_mode = #tpu.pipeline_mode<synchronous>, transform_indices = @transform_5, window_bounds = array<i64: 32, 1>}, {pipeline_mode = #tpu.pipeline_mode<synchronous>, transform_indices = @transform_6, window_bounds = array<i64: 1, 1>}, {transform_indices = @transform_7, window_bounds = array<i64: 1, 128>}]} {
    %c0 = arith.constant 0 : index
    %c0_0 = arith.constant 0 : index
    %0 = vector.load %arg1[%c0, %c0_0] : memref<16x128xf32, #tpu.memory_space<vmem>>, vector<16x128xf32>
    %c0_1 = arith.constant 0 : index
    %c0_2 = arith.constant 0 : index
    %1 = vector.load %arg2[%c0_1, %c0_2] : memref<32x16xf32, #tpu.memory_space<vmem>>, vector<32x16xf32>
    %c0_3 = arith.constant 0 : index
    %c0_4 = arith.constant 0 : index
    %2 = vector.load %arg3[%c0_3, %c0_4] : memref<32x1xf32, #tpu.memory_space<vmem>>, vector<32x1xf32>
    %cst = arith.constant dense<0.000000e+00> : vector<32x128xf32>
    %3 = tpu.matmul %1, %0, %cst {dimension_numbers = #tpu.dot_dimension_numbers<[1], [0], [0], [1], [0, 0, 1, 1], [], []>} : vector<32x16xf32>, vector<16x128xf32>, vector<32x128xf32> -> vector<32x128xf32>
    %4 = vector.broadcast %2 : vector<32x1xf32> to vector<32x128xf32>
    %5 = arith.addf %3, %4 : vector<32x128xf32>
    %cst_5 = arith.constant 0.000000e+00 : f32
    %6 = vector.broadcast %cst_5 : f32 to vector<32x128xf32>
    %7 = arith.maximumf %5, %6 : vector<32x128xf32>
    %c0_6 = arith.constant 0 : index
    %c0_7 = arith.constant 0 : index
    %8 = vector.load %arg4[%c0_6, %c0_7] : memref<32x32xf32, #tpu.memory_space<vmem>>, vector<32x32xf32>
    %c0_8 = arith.constant 0 : index
    %c0_9 = arith.constant 0 : index
    %9 = vector.load %arg5[%c0_8, %c0_9] : memref<32x1xf32, #tpu.memory_space<vmem>>, vector<32x1xf32>
    %cst_10 = arith.constant dense<0.000000e+00> : vector<32x128xf32>
    %10 = tpu.matmul %8, %7, %cst_10 {dimension_numbers = #tpu.dot_dimension_numbers<[1], [0], [0], [1], [0, 0, 1, 1], [], []>} : vector<32x32xf32>, vector<32x128xf32>, vector<32x128xf32> -> vector<32x128xf32>
    %11 = vector.broadcast %9 : vector<32x1xf32> to vector<32x128xf32>
    %12 = arith.addf %10, %11 : vector<32x128xf32>
    %cst_11 = arith.constant 0.000000e+00 : f32
    %13 = vector.broadcast %cst_11 : f32 to vector<32x128xf32>
    %14 = arith.maximumf %12, %13 : vector<32x128xf32>
    %c0_12 = arith.constant 0 : index
    %c0_13 = arith.constant 0 : index
    %15 = vector.load %arg6[%c0_12, %c0_13] : memref<32x1xf32, #tpu.memory_space<vmem>>, vector<32x1xf32>
    %c0_14 = arith.constant 0 : index
    %c0_15 = arith.constant 0 : index
    %16 = vector.load %arg7[%c0_14, %c0_15] : memref<1x1xf32, #tpu.memory_space<vmem>>, vector<1x1xf32>
    %17 = vector.broadcast %15 : vector<32x1xf32> to vector<32x128xf32>
    %18 = arith.mulf %14, %17 : vector<32x128xf32>
    %cst_16 = arith.constant dense<0.000000e+00> : vector<128xf32>
    %19 = vector.multi_reduction <add>, %18, %cst_16 [0] : vector<32x128xf32> to vector<128xf32>
    %20 = vector.shape_cast %19 : vector<128xf32> to vector<1x128xf32>
    %21 = vector.broadcast %16 : vector<1x1xf32> to vector<1x128xf32>
    %22 = arith.addf %20, %21 : vector<1x128xf32>
    %c0_17 = arith.constant 0 : index
    %c0_18 = arith.constant 0 : index
    %23 = vector.load %arg8[%c0_17, %c0_18] : memref<1x128xf32, #tpu.memory_space<vmem>>, vector<1x128xf32>
    tpu.vector_store %arg8[%c0_17, %c0_18], %22 {strides = array<i32>} : memref<1x128xf32, #tpu.memory_space<vmem>>, vector<1x128xf32>,
    return
  }
  func.func @transform_0(%arg0: i32) -> (i32, i32) {
    %c0_i32 = arith.constant 0 : i32
    %c0_i32_0 = arith.constant 0 : i32
    return %c0_i32, %arg0 : i32, i32
  }
  func.func @transform_1(%arg0: i32) -> (i32, i32) {
    %c0_i32 = arith.constant 0 : i32
    %c0_i32_0 = arith.constant 0 : i32
    %c0_i32_1 = arith.constant 0 : i32
    return %c0_i32, %c0_i32_0 : i32, i32
  }
  func.func @transform_2(%arg0: i32) -> (i32, i32) {
    %c0_i32 = arith.constant 0 : i32
    %c0_i32_0 = arith.constant 0 : i32
    %c0_i32_1 = arith.constant 0 : i32
    return %c0_i32, %c0_i32_0 : i32, i32
  }
  func.func @transform_3(%arg0: i32) -> (i32, i32) {
    %c0_i32 = arith.constant 0 : i32
    %c0_i32_0 = arith.constant 0 : i32
    %c0_i32_1 = arith.constant 0 : i32
    return %c0_i32, %c0_i32_0 : i32, i32
  }
  func.func @transform_4(%arg0: i32) -> (i32, i32) {
    %c0_i32 = arith.constant 0 : i32
    %c0_i32_0 = arith.constant 0 : i32
    %c0_i32_1 = arith.constant 0 : i32
    return %c0_i32, %c0_i32_0 : i32, i32
  }
  func.func @transform_5(%arg0: i32) -> (i32, i32) {
    %c0_i32 = arith.constant 0 : i32
    %c0_i32_0 = arith.constant 0 : i32
    %c0_i32_1 = arith.constant 0 : i32
    return %c0_i32, %c0_i32_0 : i32, i32
  }
  func.func @transform_6(%arg0: i32) -> (i32, i32) {
    %c0_i32 = arith.constant 0 : i32
    %c0_i32_0 = arith.constant 0 : i32
    %c0_i32_1 = arith.constant 0 : i32
    return %c0_i32, %c0_i32_0 : i32, i32
  }
  func.func @transform_7(%arg0: i32) -> (i32, i32) {
    %c0_i32 = arith.constant 0 : i32
    %c0_i32_0 = arith.constant 0 : i32
    return %c0_i32, %arg0 : i32, i32
  }
}

</mosaic_0001>

<llo_original>
// kernel: tpu_custom_call.1
$region0: #{tpu_custom_call.1}
  #allocation0 [shape = 'u32[]', space=smem, size = 0x4, offset = 0x4, fixed_abs, tag = 'smem constant byte address 0x4 - core index']
  #allocation1 [shape = 'u32[72,128]{1,0:T(1,128)}', space=vmem, size = 0x9000, scoped, tag = 'internal scratch']
  #allocation2 [shape = 'f32[1,1]{1,0:T(1,128)S(1)}', space=vmem, size = 0x200, scoped, tag = 'scoped memory for tpu_custom_call.1']
  %s0 = inlined_call_operand.vmem [shape: f32[16,128], index: 0, kind: input, shape index: {}]
  %s1 = inlined_call_operand.vmem [shape: f32[32,16], index: 1, kind: input, shape index: {}]
  %s2 = inlined_call_operand.vmem [shape: f32[32,1], index: 2, kind: input, shape index: {}]
  %s3 = inlined_call_operand.vmem [shape: f32[32,32], index: 3, kind: input, shape index: {}]
  %s4 = inlined_call_operand.vmem [shape: f32[32,1], index: 4, kind: input, shape index: {}]
  %s5 = inlined_call_operand.vmem [shape: f32[32,1], index: 5, kind: input, shape index: {}]
  %s6 = inlined_call_operand.<no memory space> [shape: f32[1,1], index: 6, kind: input, shape index: {}]
  %s7 = inlined_call_operand.hbm [shape: f32[1,128], index: 7, kind: output, shape index: {}]
  %s8 = sld [smem:[#allocation0]]
  $region38: #{tpu_custom_call.1} parent=0
    _
  %s10 = ssub.s32 1, %s8
  %s11 = scalar_select 0, %s10, %s8
  %v12 = vstv %s6
  %13 = vst [vmem:[#allocation2] sm:$0x1] %v12
  $region1: #{tpu_custom_call.1} parent=0
    #allocation3 [shape = 'u8[512]{0}', space=vmem, size = 0x400, scoped, tag = 'output window, operand 0, single buffered']
    #allocation4 [shape = 's32[1]{0}', space=sflag, size = 0x4, scoped, tag = 'scoped memory for tpu_custom_call.1']
    %14 = vsyncpa [#allocation4], 0
    // Predicated region
    $region2: #{tpu_custom_call.1} parent=1 // pred_check
      _
    $region3: #{tpu_custom_call.1} parent=1 // pred_check_branch
      %16 = sbr.rel (0) target = $region5
    $region4: #{tpu_custom_call.1} parent=1 // pred_region
      _
    $region5: #{tpu_custom_call.1} parent=1 // pred_fallthru
      _
    // Predicated region
    $region6: #{tpu_custom_call.1} parent=1 // pred_check
      _
    $region7: #{tpu_custom_call.1} parent=1 // pred_check_branch
      %18 = sbr.rel (0) target = $region9
    $region8: #{tpu_custom_call.1} parent=1 // pred_region
      _
    $region9: #{tpu_custom_call.1} parent=1 // pred_fallthru
      _
    // Predicated region
    $region10: #{tpu_custom_call.1} parent=1 // pred_check
      _
    $region11: #{tpu_custom_call.1} parent=1 // pred_check_branch
      %20 = sbr.rel (0) target = $region13
    $region12: #{tpu_custom_call.1} parent=1 // pred_region
      _
    $region13: #{tpu_custom_call.1} parent=1 // pred_fallthru
      _
    // Predicated region
    $region14: #{tpu_custom_call.1} parent=1 // pred_check
      _
    $region15: #{tpu_custom_call.1} parent=1 // pred_check_branch
      %22 = sbr.rel (0) target = $region17
    $region16: #{tpu_custom_call.1} parent=1 // pred_region
      _
    $region17: #{tpu_custom_call.1} parent=1 // pred_fallthru
      _
    // Predicated region
    $region18: #{tpu_custom_call.1} parent=1 // pred_check
      _
    $region19: #{tpu_custom_call.1} parent=1 // pred_check_branch
      %24 = sbr.rel (0) target = $region21
    $region20: #{tpu_custom_call.1} parent=1 // pred_region
      _
    $region21: #{tpu_custom_call.1} parent=1 // pred_fallthru
      _
    // Predicated region
    $region22: #{tpu_custom_call.1} parent=1 // pred_check
      _
    $region23: #{tpu_custom_call.1} parent=1 // pred_check_branch
      %26 = sbr.rel (0) target = $region25
    $region24: #{tpu_custom_call.1} parent=1 // pred_region
      _
    $region25: #{tpu_custom_call.1} parent=1 // pred_fallthru
      _
    // Predicated region
    $region26: #{tpu_custom_call.1} parent=1 // pred_check
      _
    $region27: #{tpu_custom_call.1} parent=1 // pred_check_branch
      %28 = sbr.rel (0) target = $region29
    $region28: #{tpu_custom_call.1} parent=1 // pred_region
      _
    $region29: #{tpu_custom_call.1} parent=1 // pred_fallthru
      _
    %v29 = vld [vmem:[%s0] sm:$0xff]
    %v30 = vld [vmem:[%s0 + $0x8] sm:$0xff]
    %v31 = vld [vmem:[%s1] sm:$0xff]
    %v32 = vld [vmem:[%s1 + $0x8] sm:$0xff]
    %v33 = vld [vmem:[%s1 + $0x10] sm:$0xff]
    %v34 = vld [vmem:[%s1 + $0x18] sm:$0xff]
    %v35 = vld [vmem:[%s2] sm:$0xff]
    %v36 = vld [vmem:[%s2 + $0x8] sm:$0xff]
    %v37 = vld [vmem:[%s2 + $0x10] sm:$0xff]
    %v38 = vld [vmem:[%s2 + $0x18] sm:$0xff]
    %40 = vset.pattern.permute.xlu0 0
    %41 = vperm.xlu0 %40, %v35
    %v42 = vpop.permute.xlu0 %41
    %45 = vset.pattern.permute.xlu0 0
    %46 = vperm.xlu0 %45, %v36
    %v47 = vpop.permute.xlu0 %46
    %50 = vset.pattern.permute.xlu0 0
    %51 = vperm.xlu0 %50, %v37
    %v52 = vpop.permute.xlu0 %51
    %55 = vset.pattern.permute.xlu0 0
    %56 = vperm.xlu0 %55, %v38
    %v57 = vpop.permute.xlu0 %56
    %vm59 = vcmask 130048
    %v61 = vsel %vm59, %v31, 0
    %v64 = vsel %vm59, %v32, 0
    %v67 = vsel %vm59, %v33, 0
    %v70 = vsel %vm59, %v34, 0
    %72 = vmatpush.msra.mxu0 0.0
    %73 = vmatpush.msra.mxu0 0.0
    %74 = vmatpush.msra.mxu0 0.0
    %75 = vmatpush.msra.mxu0 0.0
    %76 = vmatpush.msra.mxu0 0.0
    %77 = vmatpush.msra.mxu0 0.0
    %78 = vmatpush.msra.mxu0 0.0
    %79 = vmatpush.msra.mxu0 0.0
    %80 = vmatpush.msra.mxu0 0.0
    %81 = vmatpush.msra.mxu0 0.0
    %82 = vmatpush.msra.mxu0 0.0
    %83 = vmatpush.msra.mxu0 0.0
    %84 = vmatpush.msra.mxu0 0.0
    %85 = vmatpush.msra.mxu0 0.0
    %86 = vmatpush.msra.mxu0 %v30
    %87 = vmatpush.msra.mxu0 %v29
    %88 = vmatmul.f32.gmra.mxu0 %v61
    %v89 = vpop.f32.mrf.mxu0
    %v90 = vadd.f32 %v42, %v89
    %91 = vmatmul.f32.gmra.mxu0 %v64
    %v92 = vpop.f32.mrf.mxu0
    %v93 = vadd.f32 %v47, %v92
    %94 = vmatmul.f32.gmra.mxu0 %v67
    %v95 = vpop.f32.mrf.mxu0
    %v96 = vadd.f32 %v52, %v95
    %97 = vmatmul.f32.gmra.mxu0 %v70
    %v98 = vpop.f32.mrf.mxu0
    %v99 = vadd.f32 %v57, %v98
    %100 = vdwg.mxu0
    %v101 = vmax.f32 %v90, 0.0
    %v102 = vmax.f32 %v93, 0.0
    %v103 = vmax.f32 %v96, 0.0
    %v104 = vmax.f32 %v99, 0.0
    %v105 = vld [vmem:[%s3] sm:$0xff]
    %v106 = vld [vmem:[%s3 + $0x8] sm:$0xff]
    %v107 = vld [vmem:[%s3 + $0x10] sm:$0xff]
    %v108 = vld [vmem:[%s3 + $0x18] sm:$0xff]
    %v109 = vld [vmem:[%s4] sm:$0xff]
    %v110 = vld [vmem:[%s4 + $0x8] sm:$0xff]
    %v111 = vld [vmem:[%s4 + $0x10] sm:$0xff]
    %v112 = vld [vmem:[%s4 + $0x18] sm:$0xff]
    %114 = vset.pattern.permute.xlu0 0
    %115 = vperm.xlu0 %114, %v109
    %v116 = vpop.permute.xlu0 %115
    %119 = vset.pattern.permute.xlu0 0
    %120 = vperm.xlu0 %119, %v110
    %v121 = vpop.permute.xlu0 %120
    %124 = vset.pattern.permute.xlu0 0
    %125 = vperm.xlu0 %124, %v111
    %v126 = vpop.permute.xlu0 %125
    %129 = vset.pattern.permute.xlu0 0
    %130 = vperm.xlu0 %129, %v112
    %v131 = vpop.permute.xlu0 %130
    %vm133 = vcmask 261120
    %v135 = vsel %vm133, %v105, 0
    %v138 = vsel %vm133, %v106, 0
    %v141 = vsel %vm133, %v107, 0
    %v144 = vsel %vm133, %v108, 0
    %146 = vmatpush.msra.mxu0 0.0
    %147 = vmatpush.msra.mxu0 0.0
    %148 = vmatpush.msra.mxu0 0.0
    %149 = vmatpush.msra.mxu0 0.0
    %150 = vmatpush.msra.mxu0 0.0
    %151 = vmatpush.msra.mxu0 0.0
    %152 = vmatpush.msra.mxu0 0.0
    %153 = vmatpush.msra.mxu0 0.0
    %154 = vmatpush.msra.mxu0 0.0
    %155 = vmatpush.msra.mxu0 0.0
    %156 = vmatpush.msra.mxu0 0.0
    %157 = vmatpush.msra.mxu0 0.0
    %158 = vmatpush.msra.mxu0 %v104
    %159 = vmatpush.msra.mxu0 %v103
    %160 = vmatpush.msra.mxu0 %v102
    %161 = vmatpush.msra.mxu0 %v101
    %162 = vmatmul.f32.gmra.mxu0 %v135
    %v163 = vpop.f32.mrf.mxu0
    %v164 = vadd.f32 %v116, %v163
    %165 = vmatmul.f32.gmra.mxu0 %v138
    %v166 = vpop.f32.mrf.mxu0
    %v167 = vadd.f32 %v121, %v166
    %168 = vmatmul.f32.gmra.mxu0 %v141
    %v169 = vpop.f32.mrf.mxu0
    %v170 = vadd.f32 %v126, %v169
    %171 = vmatmul.f32.gmra.mxu0 %v144
    %v172 = vpop.f32.mrf.mxu0
    %v173 = vadd.f32 %v131, %v172
    %174 = vdwg.mxu0
    %v175 = vmax.f32 %v164, 0.0
    %v176 = vmax.f32 %v167, 0.0
    %v177 = vmax.f32 %v170, 0.0
    %v178 = vmax.f32 %v173, 0.0
    %v179 = vld [vmem:[%s5] sm:$0xff]
    %v180 = vld [vmem:[%s5 + $0x8] sm:$0xff]
    %v181 = vld [vmem:[%s5 + $0x10] sm:$0xff]
    %v182 = vld [vmem:[%s5 + $0x18] sm:$0xff]
    %v183 = vld [vmem:[#allocation2] sm:$0x1]
    %185 = vset.pattern.permute.xlu0 0
    %186 = vperm.xlu0 %185, %v179
    %v187 = vpop.permute.xlu0 %186
    %190 = vset.pattern.permute.xlu0 0
    %191 = vperm.xlu0 %190, %v180
    %v192 = vpop.permute.xlu0 %191
    %195 = vset.pattern.permute.xlu0 0
    %196 = vperm.xlu0 %195, %v181
    %v197 = vpop.permute.xlu0 %196
    %200 = vset.pattern.permute.xlu0 0
    %201 = vperm.xlu0 %200, %v182
    %v202 = vpop.permute.xlu0 %201
    %v204 = vmul.f32 %v175, %v187
    %v205 = vmul.f32 %v176, %v192
    %v206 = vmul.f32 %v177, %v197
    %v207 = vmul.f32 %v178, %v202
    %v208 = vadd.f32 %v204, %v205
    %v209 = vadd.f32 %v208, %v206
    %v210 = vadd.f32 %v209, %v207
    %v211 = vrot.slane %v210, 4
    %v212 = vadd.f32 %v210, %v211
    %v213 = vrot.slane %v212, 2
    %v214 = vadd.f32 %v212, %v213
    %v215 = vrot.slane %v214, 1
    %v216 = vadd.f32 %v214, %v215
    %218 = vset.pattern.permute.xlu0 0
    %219 = vperm.xlu0 %218, %v183
    %v220 = vpop.permute.xlu0 %219
    %v222 = vperm.slane %v220, 0
    %v223 = vadd.f32 %v216, %v222
    %224 = vst [vmem:[#allocation3] sm:$0x1] %v223
    // Predicated region
    $region30: #{tpu_custom_call.1} parent=1 // pred_check
      _
    $region31: #{tpu_custom_call.1} parent=1 // pred_check_branch
      %226 = sbr.rel (0) target = $region33
    $region32: #{tpu_custom_call.1} parent=1 // pred_region
      %228 = vsyncadd [#allocation4], 0
      %s230 = sshll.u32 [#allocation3], 4
      %s231 = int_to_ptr.vmem [resolvable:$true] %s230
      %s232 = sshll.u32 %s7, 4
      %s233 = int_to_ptr.hbm [resolvable:$true] %s232
      %235 = dma.vmem_to_hbm [thread:$0]  %s231, 16, %s233, [#allocation4]
    $region33: #{tpu_custom_call.1} parent=1 // pred_fallthru
      _
    // Predicated region
    $region34: #{tpu_custom_call.1} parent=1 // pred_check
      _
    $region35: #{tpu_custom_call.1} parent=1 // pred_check_branch
      %237 = sbr.rel (0) target = $region37
    $region36: #{tpu_custom_call.1} parent=1 // pred_region
      %239 = dma.done [#allocation4], 16
    $region37: #{tpu_custom_call.1} parent=1 // pred_fallthru
      _
    %240 = vsyncpa [#allocation4], 1

</llo_original>
